<compile_context>
chip_gen: v7x
topology: tpu7x:2x2x1
jax: 0.10.0
libtpu: 0.0.40
codegen_flags: <defaults>
</compile_context>

<pallas_src>
import functools

import jax
import jax.numpy as jnp
from jax.experimental import pallas as pl
from jax.experimental.pallas import tpu as pltpu


def _round_up(x, m):
    return ((x + m - 1) // m) * m


def _edge_classifier_kernel(
    src_ref,        # [tm, H]   f32 post-GAT source-node embeddings (per edge)
    dst_ref,        # [tm, H]   f32 post-GAT destination-node embeddings
    ea_ref,         # [tm, ED]  f32 raw edge features
    t_ref,          # [tm, 1]   f32 edge timestamps
    freqs_ref,      # [1, F]    f32 learned time frequencies
    wqke_ref,       # [Din, 3H] block-diag diag(Wq, Wk, We) (compute dtype)
    bqke_ref,       # [1, 3H]   f32
    w1_ref, b1_ref,  # [H, H] compute dtype, [1, H] f32
    w2_ref, b2_ref,  # [H, C] compute dtype, [1, C] f32
    out_ref,        # [tm, OUT_W] f32 : [:, :C]=logits, [:, C]=attention weight
    *, hidden_dim, num_classes,
):
    H = hidden_dim
    C = num_classes
    cd = wqke_ref.dtype

    # --- TimeEncoding in-kernel (EUP sin/cos), kept f32 until the MXU cast -------
    t = t_ref[...]                                   # [tm, 1]
    omega = freqs_ref[...]                           # [1, F]
    arg = t * omega
    te_sin = jnp.sin(arg)
    te_cos = jnp.cos(arg)

    # --- pack [src | dst | edge_attr | sin | cos] -> one slab, single MXU pass ---
    x = jnp.concatenate(
        [src_ref[...], dst_ref[...], ea_ref[...], te_sin, te_cos], axis=-1
    ).astype(cd)                                     # [tm, Din]

    qke = jnp.dot(x, wqke_ref[...],
                  preferred_element_type=jnp.float32) + bqke_ref[...]
    q = qke[:, :H]
    k = qke[:, H:2 * H]
    e = qke[:, 2 * H:3 * H]

    # --- attention gate: all in f32 (precision sensitive, sigmoid on the EUP) ----
    attn_score = jnp.sum(q * k, axis=-1, keepdims=True)       # [tm, 1]
    attn_w = jax.nn.sigmoid(attn_score)
    combined = attn_w * k + (1.0 - attn_w) * q + e             # [tm, H]

    # --- output MLP: Linear -> ReLU -> Linear, f32 accumulation -------------------
    h = jnp.dot(combined.astype(w1_ref.dtype), w1_ref[...],
                preferred_element_type=jnp.float32) + b1_ref[...]
    h = jnp.maximum(h, 0.0)
    logits = jnp.dot(h.astype(w2_ref.dtype), w2_ref[...],
                     preferred_element_type=jnp.float32) + b2_ref[...]

    # Direct stores; pad lanes [C+1:OUT_W) are never touched (wrapper slices them off).
    out_ref[:, :C] = logits.astype(out_ref.dtype)
    out_ref[:, C:C + 1] = attn_w.astype(out_ref.dtype)


def prepare_packed_params(params, compute_dtype=jnp.bfloat16):
    """One-time param prep (hoisted off the per-call path): block-diagonal
    diag(Wq, Wk, We) projection weight + compute-dtype casts."""
    H = params["wq"].shape[0]
    ED_total = params["we"].shape[0]
    Din = 2 * H + ED_total
    wqke = jnp.zeros((Din, 3 * H), jnp.float32)
    wqke = wqke.at[:H, :H].set(params["wq"])
    wqke = wqke.at[H:2 * H, H:2 * H].set(params["wk"])
    wqke = wqke.at[2 * H:, 2 * H:].set(params["we"])
    return dict(
        wqke=wqke.astype(compute_dtype),
        bqke=jnp.concatenate([params["bq"], params["bk"], params["be"]], axis=-1),
        w1=params["w1"].astype(compute_dtype), b1=params["b1"],
        w2=params["w2"].astype(compute_dtype), b2=params["b2"],
        freqs=params["freqs"].reshape(1, -1).astype(jnp.float32),
        hidden_dim=H, num_classes=int(params["w2"].shape[-1]),
    )


def _choose_tile(num_edges, tm, align=8):
    # Large tiles (default 2048) amortize per-grid-step overhead, but cap so the
    # parallel edge grid keeps >= 2 steps where possible (v7x: 2 TensorCores/chip).
    half = _round_up(pl.cdiv(num_edges, 2), align)
    tm_eff = max(align, min(tm, half))
    e_pad = _round_up(num_edges, tm_eff)
    return tm_eff, e_pad


def attention_edge_classifier_temporal(
    src_x, dst_x, edge_attr, edge_time, packed, *,
    return_attention=False, tm=2048,
):
    """Forward of TimeEncoding + AttentionEdgeClassifierTemporal.

    src_x, dst_x : [E, H]   (post-GAT node embeddings gathered per edge)
    edge_attr    : [E, ED_raw]
    edge_time    : [E]
    packed       : output of prepare_packed_params()
    """
    E, H = src_x.shape
    assert H == packed["hidden_dim"]
    C = packed["num_classes"]
    F_ = packed["freqs"].shape[-1]
    ED = edge_attr.shape[-1]
    Din = 2 * H + ED + 2 * F_
    assert Din == packed["wqke"].shape[0]

    if E == 0:  # guard against a zero-length grid
        logits = jnp.zeros((0, C), jnp.float32)
        return (logits, jnp.zeros((0,), jnp.float32)) if return_attention else logits

    tm_eff, E_pad = _choose_tile(E, tm)
    grid = (E_pad // tm_eff,)

    src = src_x.astype(jnp.float32)
    dst = dst_x.astype(jnp.float32)
    ea = edge_attr.astype(jnp.float32)
    t2d = edge_time.reshape(E, 1).astype(jnp.float32)
    if E_pad != E:
        # Only a ragged tail triggers a pad pass; tile-aligned inputs go straight in.
        pad = ((0, E_pad - E), (0, 0))
        src, dst, ea, t2d = (jnp.pad(a, pad) for a in (src, dst, ea, t2d))

    out_w = max(8, _round_up(C + 1, 8))

    kernel = functools.partial(_edge_classifier_kernel,
                               hidden_dim=H, num_classes=C)

    row_spec = lambda d: pl.BlockSpec((tm_eff, d), lambda i: (i, 0))   # tiled over edges
    full_spec = lambda shp: pl.BlockSpec(shp, lambda i: (0, 0))        # resident weights

    act_bytes = E_pad * (2 * H + ED + 1) * 4
    w_bytes = sum(int(packed[k].size) * packed[k].dtype.itemsize
                  for k in ("wqke", "bqke", "w1", "b1", "w2", "b2", "freqs"))
    cost = pl.CostEstimate(
        flops=2 * E_pad * (Din * 3 * H + H * H + H * C),
        transcendentals=E_pad * (2 * F_ + 1),
        bytes_accessed=act_bytes + w_bytes + E_pad * out_w * 4,
    )

    fused = pl.pallas_call(
        kernel,
        grid_spec=pltpu.PrefetchScalarGridSpec(
            num_scalar_prefetch=0,
            grid=grid,
            in_specs=[
                row_spec(H),                 # src_x
                row_spec(H),                 # dst_x
                row_spec(ED),                # edge_attr
                row_spec(1),                 # edge_time
                full_spec((1, F_)),          # freqs
                full_spec((Din, 3 * H)),     # Wqke (block-diag)
                full_spec((1, 3 * H)),       # bqke
                full_spec((H, H)),           # W1
                full_spec((1, H)),           # b1
                full_spec((H, C)),           # W2
                full_spec((1, C)),           # b2
            ],
            out_specs=row_spec(out_w),
        ),
        out_shape=jax.ShapeDtypeStruct((E_pad, out_w), jnp.float32),
        compiler_params=pltpu.CompilerParams(
            dimension_semantics=("parallel",),
            vmem_limit_bytes=32 * 1024 * 1024,   # v5e default scoped limit is 16 MiB
        ),
        cost_estimate=cost,
    )(src, dst, ea, t2d, packed["freqs"],
      packed["wqke"], packed["bqke"], packed["w1"], packed["b1"],
      packed["w2"], packed["b2"])

    logits = fused[:E, :C]
    if return_attention:
        return logits, fused[:E, C]
    return logits


def init_params(key, hidden_dim, edge_dim_total, time_dim, num_classes):
    """Deterministic synthetic init (PyTorch-Linear-style uniform ranges)."""
    ks = jax.random.split(key, 11)

    def linear(kw, kb, fan_in, fan_out):
        bound = 1.0 / jnp.sqrt(fan_in)
        w = jax.random.uniform(kw, (fan_in, fan_out), jnp.float32, -bound, bound)
        b = jax.random.uniform(kb, (1, fan_out), jnp.float32, -bound, bound)
        return w, b

    wq, bq = linear(ks[0], ks[1], hidden_dim, hidden_dim)
    wk, bk = linear(ks[2], ks[3], hidden_dim, hidden_dim)
    we, be = linear(ks[4], ks[5], edge_dim_total, hidden_dim)
    w1, b1 = linear(ks[6], ks[7], hidden_dim, hidden_dim)
    w2, b2 = linear(ks[8], ks[9], hidden_dim, num_classes)
    freqs = jax.random.normal(ks[10], (time_dim // 2,), jnp.float32)
    return dict(wq=wq, bq=bq, wk=wk, bk=bk, we=we, be=be,
                w1=w1, b1=b1, w2=w2, b2=b2, freqs=freqs)


def _reference_forward(src_x, dst_x, edge_attr, edge_time, p,
                       compute_dtype=jnp.float32):
    """Pure-JAX reference with the same precision policy as the kernel."""
    t = edge_time[:, None].astype(jnp.float32)
    omega = p["freqs"][None, :]
    te = jnp.concatenate([jnp.sin(t * omega), jnp.cos(t * omega)], axis=-1)
    ea = jnp.concatenate([edge_attr, te], axis=-1)

    def lin(x, w, b):
        return jnp.dot(x.astype(compute_dtype), w.astype(compute_dtype),
                       preferred_element_type=jnp.float32) + b

    q = lin(src_x, p["wq"], p["bq"])
    k = lin(dst_x, p["wk"], p["bk"])
    e = lin(ea, p["we"], p["be"])
    score = jnp.sum(q * k, axis=-1, keepdims=True)
    w = jax.nn.sigmoid(score)
    combined = w * k + (1.0 - w) * q + e
    h = jnp.maximum(lin(combined, p["w1"], p["b1"]), 0.0)
    logits = lin(h, p["w2"], p["b2"])
    return logits, jnp.squeeze(w, -1)


if __name__ == "__main__":
    hidden_dim, edge_dim, time_dim, num_classes = 32, 16, 16, 4

    key = jax.random.PRNGKey(0)
    params = init_params(jax.random.fold_in(key, 123),
                         hidden_dim, edge_dim + time_dim, time_dim, num_classes)
    packed_f32 = prepare_packed_params(params, compute_dtype=jnp.float32)
    packed_bf16 = prepare_packed_params(params, compute_dtype=jnp.bfloat16)

    # small case (tiny tile, 2-step grid) and a larger case exercising the ragged tail
    for num_edges in (16, 1000):
        ks, kd, ke, kt = jax.random.split(jax.random.fold_in(key, num_edges), 4)
        src_x = jax.random.normal(ks, (num_edges, hidden_dim), jnp.float32)
        dst_x = jax.random.normal(kd, (num_edges, hidden_dim), jnp.float32)
        edge_attr = jax.random.normal(ke, (num_edges, edge_dim), jnp.float32)
        edge_time = jax.random.uniform(kt, (num_edges,), jnp.float32)

        # exact-math check: f32 compute path vs f32 reference
        lo32, at32 = attention_edge_classifier_temporal(
            src_x, dst_x, edge_attr, edge_time, packed_f32,
            return_attention=True, tm=2048)
        jax.block_until_ready((lo32, at32))
        ref_l, ref_a = _reference_forward(src_x, dst_x, edge_attr, edge_time, params)
        assert jnp.allclose(lo32, ref_l, atol=1e-4, rtol=1e-4)
        assert jnp.allclose(at32, ref_a, atol=1e-5, rtol=1e-5)

        # fast path: bf16 MXU inputs (f32 accumulation) vs same-precision-policy reference
        lobf, atbf = attention_edge_classifier_temporal(
            src_x, dst_x, edge_attr, edge_time, packed_bf16,
            return_attention=True, tm=2048)
        jax.block_until_ready((lobf, atbf))
        ref_lb, ref_ab = _reference_forward(src_x, dst_x, edge_attr, edge_time, params,
                                            compute_dtype=jnp.bfloat16)
        assert jnp.allclose(lobf, ref_lb, atol=2e-2, rtol=2e-2)
        assert jnp.allclose(atbf, ref_ab, atol=2e-2, rtol=2e-2)

    print("KERNEL_OK")
</pallas_src>

<mosaic_0001>
module attributes {stable_mosaic.version = 11 : i64} {
  func.func @_edge_classifier_kernel(%arg0: i32, %arg1: memref<8x32xf32, #tpu.memory_space<vmem>>, %arg2: memref<8x32xf32, #tpu.memory_space<vmem>>, %arg3: memref<8x16xf32, #tpu.memory_space<vmem>>, %arg4: memref<8x1xf32, #tpu.memory_space<vmem>>, %arg5: memref<1x8xf32, #tpu.memory_space<vmem>>, %arg6: memref<96x96xf32, #tpu.memory_space<vmem>>, %arg7: memref<1x96xf32, #tpu.memory_space<vmem>>, %arg8: memref<32x32xf32, #tpu.memory_space<vmem>>, %arg9: memref<1x32xf32, #tpu.memory_space<vmem>>, %arg10: memref<32x4xf32, #tpu.memory_space<vmem>>, %arg11: memref<1x4xf32, #tpu.memory_space<vmem>>, %arg12: memref<8x8xf32, #tpu.memory_space<vmem>>) attributes {dimension_semantics = [#tpu.dimension_semantics<parallel>], iteration_bounds = array<i64: 2>, scalar_prefetch = 0 : i64, scratch_operands = 0 : i64, tpu.core_type = #tpu.core_type<tc>, window_params = [{transform_indices = @transform_0, window_bounds = array<i64: 8, 32>}, {transform_indices = @transform_1, window_bounds = array<i64: 8, 32>}, {transform_indices = @transform_2, window_bounds = array<i64: 8, 16>}, {transform_indices = @transform_3, window_bounds = array<i64: 8, 1>}, {pipeline_mode = #tpu.pipeline_mode<synchronous>, transform_indices = @transform_4, window_bounds = array<i64: 1, 8>}, {pipeline_mode = #tpu.pipeline_mode<synchronous>, transform_indices = @transform_5, window_bounds = array<i64: 96, 96>}, {pipeline_mode = #tpu.pipeline_mode<synchronous>, transform_indices = @transform_6, window_bounds = array<i64: 1, 96>}, {pipeline_mode = #tpu.pipeline_mode<synchronous>, transform_indices = @transform_7, window_bounds = array<i64: 32, 32>}, {pipeline_mode = #tpu.pipeline_mode<synchronous>, transform_indices = @transform_8, window_bounds = array<i64: 1, 32>}, {pipeline_mode = #tpu.pipeline_mode<synchronous>, transform_indices = @transform_9, window_bounds = array<i64: 32, 4>}, {pipeline_mode = #tpu.pipeline_mode<synchronous>, transform_indices = @transform_10, window_bounds = array<i64: 1, 4>}, {transform_indices = @transform_11, window_bounds = array<i64: 8, 8>}]} {
    %c0 = arith.constant 0 : index
    %c0_0 = arith.constant 0 : index
    %0 = vector.load %arg4[%c0, %c0_0] : memref<8x1xf32, #tpu.memory_space<vmem>>, vector<8x1xf32>
    %c0_1 = arith.constant 0 : index
    %c0_2 = arith.constant 0 : index
    %1 = vector.load %arg5[%c0_1, %c0_2] : memref<1x8xf32, #tpu.memory_space<vmem>>, vector<1x8xf32>
    %2 = vector.broadcast %0 : vector<8x1xf32> to vector<8x8xf32>
    %3 = vector.broadcast %1 : vector<1x8xf32> to vector<8x8xf32>
    %4 = arith.mulf %2, %3 : vector<8x8xf32>
    %5 = math.sin %4 : vector<8x8xf32>
    %6 = math.cos %4 : vector<8x8xf32>
    %c0_3 = arith.constant 0 : index
    %c0_4 = arith.constant 0 : index
    %7 = vector.load %arg1[%c0_3, %c0_4] : memref<8x32xf32, #tpu.memory_space<vmem>>, vector<8x32xf32>
    %c0_5 = arith.constant 0 : index
    %c0_6 = arith.constant 0 : index
    %8 = vector.load %arg2[%c0_5, %c0_6] : memref<8x32xf32, #tpu.memory_space<vmem>>, vector<8x32xf32>
    %c0_7 = arith.constant 0 : index
    %c0_8 = arith.constant 0 : index
    %9 = vector.load %arg3[%c0_7, %c0_8] : memref<8x16xf32, #tpu.memory_space<vmem>>, vector<8x16xf32>
    %10 = tpu.concatenate %7, %8, %9, %5, %6 in 1 : vector<8x32xf32>, vector<8x32xf32>, vector<8x16xf32>, vector<8x8xf32>, vector<8x8xf32> -> vector<8x96xf32>
    %c0_9 = arith.constant 0 : index
    %c0_10 = arith.constant 0 : index
    %11 = vector.load %arg6[%c0_9, %c0_10] : memref<96x96xf32, #tpu.memory_space<vmem>>, vector<96x96xf32>
    %cst = arith.constant dense<0.000000e+00> : vector<8x96xf32>
    %12 = tpu.matmul %10, %11, %cst {dimension_numbers = #tpu.dot_dimension_numbers<[1], [0], [0], [1], [0, 0, 1, 1], [], []>} : vector<8x96xf32>, vector<96x96xf32>, vector<8x96xf32> -> vector<8x96xf32>
    %c0_11 = arith.constant 0 : index
    %c0_12 = arith.constant 0 : index
    %13 = vector.load %arg7[%c0_11, %c0_12] : memref<1x96xf32, #tpu.memory_space<vmem>>, vector<1x96xf32>
    %14 = vector.broadcast %13 : vector<1x96xf32> to vector<8x96xf32>
    %15 = arith.addf %12, %14 : vector<8x96xf32>
    %16 = vector.extract_strided_slice %15 {offsets = [0, 0], sizes = [8, 32], strides = [1, 1]} : vector<8x96xf32> to vector<8x32xf32>
    %17 = vector.extract_strided_slice %15 {offsets = [0, 32], sizes = [8, 32], strides = [1, 1]} : vector<8x96xf32> to vector<8x32xf32>
    %18 = vector.extract_strided_slice %15 {offsets = [0, 64], sizes = [8, 32], strides = [1, 1]} : vector<8x96xf32> to vector<8x32xf32>
    %19 = arith.mulf %16, %17 : vector<8x32xf32>
    %cst_13 = arith.constant dense<0.000000e+00> : vector<8xf32>
    %20 = vector.multi_reduction <add>, %19, %cst_13 [1] : vector<8x32xf32> to vector<8xf32>
    %21 = vector.shape_cast %20 : vector<8xf32> to vector<8x1xf32>
    %22 = arith.negf %21 : vector<8x1xf32>
    %23 = math.exp %22 : vector<8x1xf32>
    %cst_14 = arith.constant 1.000000e+00 : f32
    %24 = vector.broadcast %cst_14 : f32 to vector<8x1xf32>
    %25 = arith.addf %24, %23 : vector<8x1xf32>
    %26 = arith.divf %24, %25 : vector<8x1xf32>
    %27 = vector.broadcast %26 : vector<8x1xf32> to vector<8x32xf32>
    %28 = arith.mulf %27, %17 : vector<8x32xf32>
    %cst_15 = arith.constant 1.000000e+00 : f32
    %29 = vector.broadcast %cst_15 : f32 to vector<8x1xf32>
    %30 = arith.subf %29, %26 : vector<8x1xf32>
    %31 = vector.broadcast %30 : vector<8x1xf32> to vector<8x32xf32>
    %32 = arith.mulf %31, %16 : vector<8x32xf32>
    %33 = arith.addf %28, %32 : vector<8x32xf32>
    %34 = arith.addf %33, %18 : vector<8x32xf32>
    %c0_16 = arith.constant 0 : index
    %c0_17 = arith.constant 0 : index
    %35 = vector.load %arg8[%c0_16, %c0_17] : memref<32x32xf32, #tpu.memory_space<vmem>>, vector<32x32xf32>
    %cst_18 = arith.constant dense<0.000000e+00> : vector<8x32xf32>
    %36 = tpu.matmul %34, %35, %cst_18 {dimension_numbers = #tpu.dot_dimension_numbers<[1], [0], [0], [1], [0, 0, 1, 1], [], []>} : vector<8x32xf32>, vector<32x32xf32>, vector<8x32xf32> -> vector<8x32xf32>
    %c0_19 = arith.constant 0 : index
    %c0_20 = arith.constant 0 : index
    %37 = vector.load %arg9[%c0_19, %c0_20] : memref<1x32xf32, #tpu.memory_space<vmem>>, vector<1x32xf32>
    %38 = vector.broadcast %37 : vector<1x32xf32> to vector<8x32xf32>
    %39 = arith.addf %36, %38 : vector<8x32xf32>
    %cst_21 = arith.constant 0.000000e+00 : f32
    %40 = vector.broadcast %cst_21 : f32 to vector<8x32xf32>
    %41 = arith.maximumf %39, %40 : vector<8x32xf32>
    %c0_22 = arith.constant 0 : index
    %c0_23 = arith.constant 0 : index
    %42 = vector.load %arg10[%c0_22, %c0_23] : memref<32x4xf32, #tpu.memory_space<vmem>>, vector<32x4xf32>
    %cst_24 = arith.constant dense<0.000000e+00> : vector<8x4xf32>
    %43 = tpu.matmul %41, %42, %cst_24 {dimension_numbers = #tpu.dot_dimension_numbers<[1], [0], [0], [1], [0, 0, 1, 1], [], []>} : vector<8x32xf32>, vector<32x4xf32>, vector<8x4xf32> -> vector<8x4xf32>
    %c0_25 = arith.constant 0 : index
    %c0_26 = arith.constant 0 : index
    %44 = vector.load %arg11[%c0_25, %c0_26] : memref<1x4xf32, #tpu.memory_space<vmem>>, vector<1x4xf32>
    %45 = vector.broadcast %44 : vector<1x4xf32> to vector<8x4xf32>
    %46 = arith.addf %43, %45 : vector<8x4xf32>
    %c0_27 = arith.constant 0 : index
    %c0_28 = arith.constant 0 : index
    %47 = vector.load %arg12[%c0_27, %c0_28] : memref<8x8xf32, #tpu.memory_space<vmem>>, vector<8x4xf32>
    tpu.vector_store %arg12[%c0_27, %c0_28], %46 {strides = array<i32>} : memref<8x8xf32, #tpu.memory_space<vmem>>, vector<8x4xf32>,
    %c0_29 = arith.constant 0 : index
    %c4 = arith.constant 4 : index
    %48 = vector.load %arg12[%c0_29, %c4] : memref<8x8xf32, #tpu.memory_space<vmem>>, vector<8x1xf32>
    tpu.vector_store %arg12[%c0_29, %c4], %26 {strides = array<i32>} : memref<8x8xf32, #tpu.memory_space<vmem>>, vector<8x1xf32>,
    return
  }
  func.func @transform_0(%arg0: i32) -> (i32, i32) {
    %c0_i32 = arith.constant 0 : i32
    %c0_i32_0 = arith.constant 0 : i32
    return %arg0, %c0_i32 : i32, i32
  }
  func.func @transform_1(%arg0: i32) -> (i32, i32) {
    %c0_i32 = arith.constant 0 : i32
    %c0_i32_0 = arith.constant 0 : i32
    return %arg0, %c0_i32 : i32, i32
  }
  func.func @transform_2(%arg0: i32) -> (i32, i32) {
    %c0_i32 = arith.constant 0 : i32
    %c0_i32_0 = arith.constant 0 : i32
    return %arg0, %c0_i32 : i32, i32
  }
  func.func @transform_3(%arg0: i32) -> (i32, i32) {
    %c0_i32 = arith.constant 0 : i32
    %c0_i32_0 = arith.constant 0 : i32
    return %arg0, %c0_i32 : i32, i32
  }
  func.func @transform_4(%arg0: i32) -> (i32, i32) {
    %c0_i32 = arith.constant 0 : i32
    %c0_i32_0 = arith.constant 0 : i32
    %c0_i32_1 = arith.constant 0 : i32
    return %c0_i32, %c0_i32_0 : i32, i32
  }
  func.func @transform_5(%arg0: i32) -> (i32, i32) {
    %c0_i32 = arith.constant 0 : i32
    %c0_i32_0 = arith.constant 0 : i32
    %c0_i32_1 = arith.constant 0 : i32
    return %c0_i32, %c0_i32_0 : i32, i32
  }
  func.func @transform_6(%arg0: i32) -> (i32, i32) {
    %c0_i32 = arith.constant 0 : i32
    %c0_i32_0 = arith.constant 0 : i32
    %c0_i32_1 = arith.constant 0 : i32
    return %c0_i32, %c0_i32_0 : i32, i32
  }
  func.func @transform_7(%arg0: i32) -> (i32, i32) {
    %c0_i32 = arith.constant 0 : i32
    %c0_i32_0 = arith.constant 0 : i32
    %c0_i32_1 = arith.constant 0 : i32
    return %c0_i32, %c0_i32_0 : i32, i32
  }
  func.func @transform_8(%arg0: i32) -> (i32, i32) {
    %c0_i32 = arith.constant 0 : i32
    %c0_i32_0 = arith.constant 0 : i32
    %c0_i32_1 = arith.constant 0 : i32
    return %c0_i32, %c0_i32_0 : i32, i32
  }
  func.func @transform_9(%arg0: i32) -> (i32, i32) {
    %c0_i32 = arith.constant 0 : i32
    %c0_i32_0 = arith.constant 0 : i32
    %c0_i32_1 = arith.constant 0 : i32
    return %c0_i32, %c0_i32_0 : i32, i32
  }
  func.func @transform_10(%arg0: i32) -> (i32, i32) {
    %c0_i32 = arith.constant 0 : i32
    %c0_i32_0 = arith.constant 0 : i32
    %c0_i32_1 = arith.constant 0 : i32
    return %c0_i32, %c0_i32_0 : i32, i32
  }
  func.func @transform_11(%arg0: i32) -> (i32, i32) {
    %c0_i32 = arith.constant 0 : i32
    %c0_i32_0 = arith.constant 0 : i32
    return %arg0, %c0_i32 : i32, i32
  }
}

</mosaic_0001>

<llo_original>
// kernel: tpu_custom_call.1
$region0: #{tpu_custom_call.1}
  #allocation0 [shape = 'u32[]', space=smem, size = 0x4, offset = 0x4, fixed_abs, tag = 'smem constant byte address 0x4 - core index']
  #allocation1 [shape = 'u32[144,128]{1,0:T(1,128)}', space=vmem, size = 0x12000, scoped, tag = 'internal scratch']
  %s0 = inlined_call_operand.vmem [shape: f32[16,32], index: 0, kind: input, shape index: {}]
  %s1 = inlined_call_operand.vmem [shape: f32[16,32], index: 1, kind: input, shape index: {}]
  %s2 = inlined_call_operand.hbm [shape: f32[16,16], index: 2, kind: input, shape index: {}]
  %s3 = inlined_call_operand.vmem [shape: f32[16,1], index: 3, kind: input, shape index: {}]
  %s4 = inlined_call_operand.hbm [shape: f32[1,8], index: 4, kind: input, shape index: {}]
  %s5 = inlined_call_operand.hbm [shape: f32[96,96], index: 5, kind: input, shape index: {}]
  %s6 = inlined_call_operand.vmem [shape: f32[1,96], index: 6, kind: input, shape index: {}]
  %s7 = inlined_call_operand.vmem [shape: f32[32,32], index: 7, kind: input, shape index: {}]
  %s8 = inlined_call_operand.vmem [shape: f32[1,32], index: 8, kind: input, shape index: {}]
  %s9 = inlined_call_operand.vmem [shape: f32[32,4], index: 9, kind: input, shape index: {}]
  %s10 = inlined_call_operand.vmem [shape: f32[1,4], index: 10, kind: input, shape index: {}]
  %s11 = inlined_call_operand.vmem [shape: f32[16,8], index: 11, kind: output, shape index: {}]
  %s12 = sld [smem:[#allocation0]]
  $region89: #{tpu_custom_call.1} parent=0
    _
  %s14 = ssub.s32 1, %s12
  %s15 = scalar_select 0, %s14, %s12
  $region1: #{tpu_custom_call.1} parent=0
    #allocation2 [shape = 'u8[8192]{0}', space=vmem, size = 0x2000, scoped, tag = 'input window, operand 2']
    #allocation3 [shape = 's32[2]{0}', space=sflag, size = 0x8, scoped, tag = 'scoped memory for tpu_custom_call.1']
    #allocation4 [shape = 'u8[512]{0}', space=vmem, size = 0x400, scoped, tag = 'input window, operand 4, single buffered']
    #allocation5 [shape = 's32[1]{0}', space=sflag, size = 0x4, scoped, tag = 'scoped memory for tpu_custom_call.1']
    #allocation6 [shape = 'u8[49152]{0}', space=vmem, size = 0xc000, scoped, tag = 'input window, operand 5, single buffered']
    %16 = vsyncpa [#allocation3], 0
    %s17 = scalar_lea.sflag [#allocation3], 1
    %18 = vsyncpa %s17, 0
    %19 = vsyncpa [#allocation5], 0
    loop: start=0, step=1, limit=4
    $region2: #{tpu_custom_call.1} parent=1 // loop_pre_header
      _
    $region3: #{tpu_custom_call.1} parent=1 // loop_header
      %s21 = sphi 0, %s25
      %p22 = scmp.ge.s32.totalorder %s21, 4
      %s31 = sphi 0, %s33
      %s34 = sphi 0, %s31
      %s35 = sphi 0, %s34
      %s51 = sphi 0, %s35
      %s57 = sphi 0, %s59
      %s60 = sphi 0, %s57
      %s61 = sphi 0, %s60
      %s77 = sphi 0, %s61
      %s83 = sphi 0, %s85
      %s86 = sphi 0, %s83
      %s87 = sphi 0, %s86
      %s103 = sphi 0, %s87
      %s109 = sphi 0, %s111
      %s112 = sphi 0, %s109
      %s113 = sphi 0, %s112
      %s129 = sphi 0, %s113
      %s133 = sphi 0, %s133
      %s135 = sphi 0, %s133
      %s136 = sphi 0, %s135
      %s150 = sphi 0, %s136
      %s154 = sphi 0, %s154
      %s156 = sphi 0, %s154
      %s157 = sphi 0, %s156
      %s171 = sphi 0, %s157
      %s175 = sphi 0, %s175
      %s177 = sphi 0, %s175
      %s178 = sphi 0, %s177
      %s192 = sphi 0, %s178
      %s196 = sphi 0, %s196
      %s198 = sphi 0, %s196
      %s199 = sphi 0, %s198
      %s213 = sphi 0, %s199
      %s217 = sphi 0, %s217
      %s219 = sphi 0, %s217
      %s220 = sphi 0, %s219
      %s234 = sphi 0, %s220
      %s238 = sphi 0, %s238
      %s240 = sphi 0, %s238
      %s241 = sphi 0, %s240
      %s255 = sphi 0, %s241
      %s259 = sphi 0, %s259
      %s261 = sphi 0, %s259
      %s262 = sphi 0, %s261
      %s276 = sphi 0, %s262
      %s282 = sphi 0, %s284
      %s285 = sphi 0, %s282
      %s286 = sphi 0, %s285
      %s302 = sphi 0, %s286
    $region4: #{tpu_custom_call.1} parent=1 // loop_header_branch
      %24 = sbr.rel (%p22) target = $region8
    $region5: #{tpu_custom_call.1} parent=1 // loop_body
      %s26 = ssub.s32 %s21, 1
      %s27 = ssub.s32 %s21, 2
      %s28 = sadd.s32 %s21, 1
      %s29 = ssub.s32 %s21, %s28
      %p30 = scmp.eq.s32.totalorder %s29, 0
      %s32 = sadd.s32 %s31, 1
      %s33 = scalar_select %p30, %s31, %s32
      %p36 = pneg %p30
      %p37 = scmp.eq.s32.totalorder %s21, 1
      %p38 = por %p36, %p37
      %p39 = scmp.ne.s32.totalorder %s31, %s34
      %p40 = scmp.eq.s32.totalorder %s21, 0
      %p41 = por %p39, %p40
      %p42 = scmp.ne.s32.totalorder %s31, %s34
      %p43 = scmp.eq.s32.totalorder %s26, 1
      %p44 = por %p42, %p43
      %p45 = scmp.ne.s32.totalorder %s34, %s35
      %p46 = scmp.eq.s32.totalorder %s26, 0
      %p47 = por %p45, %p46
      %p48 = scmp.ne.s32.totalorder %s34, %s35
      %p49 = scmp.eq.s32.totalorder %s27, 1
      %p50 = por %p48, %p49
      %p52 = scmp.ne.s32.totalorder %s35, %s51
      %p53 = scmp.eq.s32.totalorder %s27, 0
      %p54 = por %p52, %p53
      %s55 = ssub.s32 %s21, %s28
      %p56 = scmp.eq.s32.totalorder %s55, 0
      %s58 = sadd.s32 %s57, 1
      %s59 = scalar_select %p56, %s57, %s58
      %p62 = pneg %p56
      %p63 = scmp.eq.s32.totalorder %s21, 1
      %p64 = por %p62, %p63
      %p65 = scmp.ne.s32.totalorder %s57, %s60
      %p66 = scmp.eq.s32.totalorder %s21, 0
      %p67 = por %p65, %p66
      %p68 = scmp.ne.s32.totalorder %s57, %s60
      %p69 = scmp.eq.s32.totalorder %s26, 1
      %p70 = por %p68, %p69
      %p71 = scmp.ne.s32.totalorder %s60, %s61
      %p72 = scmp.eq.s32.totalorder %s26, 0
      %p73 = por %p71, %p72
      %p74 = scmp.ne.s32.totalorder %s60, %s61
      %p75 = scmp.eq.s32.totalorder %s27, 1
      %p76 = por %p74, %p75
      %p78 = scmp.ne.s32.totalorder %s61, %s77
      %p79 = scmp.eq.s32.totalorder %s27, 0
      %p80 = por %p78, %p79
      %s81 = ssub.s32 %s21, %s28
      %p82 = scmp.eq.s32.totalorder %s81, 0
      %s84 = sadd.s32 %s83, 1
      %s85 = scalar_select %p82, %s83, %s84
      %p88 = pneg %p82
      %p89 = scmp.eq.s32.totalorder %s21, 1
      %p90 = por %p88, %p89
      %p91 = scmp.ne.s32.totalorder %s83, %s86
      %p92 = scmp.eq.s32.totalorder %s21, 0
      %p93 = por %p91, %p92
      %p94 = scmp.ne.s32.totalorder %s83, %s86
      %p95 = scmp.eq.s32.totalorder %s26, 1
      %p96 = por %p94, %p95
      %p97 = scmp.ne.s32.totalorder %s86, %s87
      %p98 = scmp.eq.s32.totalorder %s26, 0
      %p99 = por %p97, %p98
      %p100 = scmp.ne.s32.totalorder %s86, %s87
      %p101 = scmp.eq.s32.totalorder %s27, 1
      %p102 = por %p100, %p101
      %p104 = scmp.ne.s32.totalorder %s87, %s103
      %p105 = scmp.eq.s32.totalorder %s27, 0
      %p106 = por %p104, %p105
      %s107 = ssub.s32 %s21, %s28
      %p108 = scmp.eq.s32.totalorder %s107, 0
      %s110 = sadd.s32 %s109, 1
      %s111 = scalar_select %p108, %s109, %s110
      %p114 = pneg %p108
      %p115 = scmp.eq.s32.totalorder %s21, 1
      %p116 = por %p114, %p115
      %p117 = scmp.ne.s32.totalorder %s109, %s112
      %p118 = scmp.eq.s32.totalorder %s21, 0
      %p119 = por %p117, %p118
      %p120 = scmp.ne.s32.totalorder %s109, %s112
      %p121 = scmp.eq.s32.totalorder %s26, 1
      %p122 = por %p120, %p121
      %p123 = scmp.ne.s32.totalorder %s112, %s113
      %p124 = scmp.eq.s32.totalorder %s26, 0
      %p125 = por %p123, %p124
      %p126 = scmp.ne.s32.totalorder %s112, %s113
      %p127 = scmp.eq.s32.totalorder %s27, 1
      %p128 = por %p126, %p127
      %p130 = scmp.ne.s32.totalorder %s113, %s129
      %p131 = scmp.eq.s32.totalorder %s27, 0
      %p132 = por %p130, %p131
      %s134 = sadd.s32 %s133, 1
      %p137 = scmp.eq.s32.totalorder %s21, 1
      %p138 = scmp.ne.s32.totalorder %s133, %s135
      %p139 = scmp.eq.s32.totalorder %s21, 0
      %p140 = por %p138, %p139
      %p141 = scmp.ne.s32.totalorder %s133, %s135
      %p142 = scmp.eq.s32.totalorder %s26, 1
      %p143 = por %p141, %p142
      %p144 = scmp.ne.s32.totalorder %s135, %s136
      %p145 = scmp.eq.s32.totalorder %s26, 0
      %p146 = por %p144, %p145
      %p147 = scmp.ne.s32.totalorder %s135, %s136
      %p148 = scmp.eq.s32.totalorder %s27, 1
      %p149 = por %p147, %p148
      %p151 = scmp.ne.s32.totalorder %s136, %s150
      %p152 = scmp.eq.s32.totalorder %s27, 0
      %p153 = por %p151, %p152
      %s155 = sadd.s32 %s154, 1
      %p158 = scmp.eq.s32.totalorder %s21, 1
      %p159 = scmp.ne.s32.totalorder %s154, %s156
      %p160 = scmp.eq.s32.totalorder %s21, 0
      %p161 = por %p159, %p160
      %p162 = scmp.ne.s32.totalorder %s154, %s156
      %p163 = scmp.eq.s32.totalorder %s26, 1
      %p164 = por %p162, %p163
      %p165 = scmp.ne.s32.totalorder %s156, %s157
      %p166 = scmp.eq.s32.totalorder %s26, 0
      %p167 = por %p165, %p166
      %p168 = scmp.ne.s32.totalorder %s156, %s157
      %p169 = scmp.eq.s32.totalorder %s27, 1
      %p170 = por %p168, %p169
      %p172 = scmp.ne.s32.totalorder %s157, %s171
      %p173 = scmp.eq.s32.totalorder %s27, 0
      %p174 = por %p172, %p173
      %s176 = sadd.s32 %s175, 1
      %p179 = scmp.eq.s32.totalorder %s21, 1
      %p180 = scmp.ne.s32.totalorder %s175, %s177
      %p181 = scmp.eq.s32.totalorder %s21, 0
      %p182 = por %p180, %p181
      %p183 = scmp.ne.s32.totalorder %s175, %s177
      %p184 = scmp.eq.s32.totalorder %s26, 1
      %p185 = por %p183, %p184
      %p186 = scmp.ne.s32.totalorder %s177, %s178
      %p187 = scmp.eq.s32.totalorder %s26, 0
      %p188 = por %p186, %p187
      %p189 = scmp.ne.s32.totalorder %s177, %s178
      %p190 = scmp.eq.s32.totalorder %s27, 1
      %p191 = por %p189, %p190
      %p193 = scmp.ne.s32.totalorder %s178, %s192
      %p194 = scmp.eq.s32.totalorder %s27, 0
      %p195 = por %p193, %p194
      %s197 = sadd.s32 %s196, 1
      %p200 = scmp.eq.s32.totalorder %s21, 1
      %p201 = scmp.ne.s32.totalorder %s196, %s198
      %p202 = scmp.eq.s32.totalorder %s21, 0
      %p203 = por %p201, %p202
      %p204 = scmp.ne.s32.totalorder %s196, %s198
      %p205 = scmp.eq.s32.totalorder %s26, 1
      %p206 = por %p204, %p205
      %p207 = scmp.ne.s32.totalorder %s198, %s199
      %p208 = scmp.eq.s32.totalorder %s26, 0
      %p209 = por %p207, %p208
      %p210 = scmp.ne.s32.totalorder %s198, %s199
      %p211 = scmp.eq.s32.totalorder %s27, 1
      %p212 = por %p210, %p211
      %p214 = scmp.ne.s32.totalorder %s199, %s213
      %p215 = scmp.eq.s32.totalorder %s27, 0
      %p216 = por %p214, %p215
      %s218 = sadd.s32 %s217, 1
      %p221 = scmp.eq.s32.totalorder %s21, 1
      %p222 = scmp.ne.s32.totalorder %s217, %s219
      %p223 = scmp.eq.s32.totalorder %s21, 0
      %p224 = por %p222, %p223
      %p225 = scmp.ne.s32.totalorder %s217, %s219
      %p226 = scmp.eq.s32.totalorder %s26, 1
      %p227 = por %p225, %p226
      %p228 = scmp.ne.s32.totalorder %s219, %s220
      %p229 = scmp.eq.s32.totalorder %s26, 0
      %p230 = por %p228, %p229
      %p231 = scmp.ne.s32.totalorder %s219, %s220
      %p232 = scmp.eq.s32.totalorder %s27, 1
      %p233 = por %p231, %p232
      %p235 = scmp.ne.s32.totalorder %s220, %s234
      %p236 = scmp.eq.s32.totalorder %s27, 0
      %p237 = por %p235, %p236
      %s239 = sadd.s32 %s238, 1
      %p242 = scmp.eq.s32.totalorder %s21, 1
      %p243 = scmp.ne.s32.totalorder %s238, %s240
      %p244 = scmp.eq.s32.totalorder %s21, 0
      %p245 = por %p243, %p244
      %p246 = scmp.ne.s32.totalorder %s238, %s240
      %p247 = scmp.eq.s32.totalorder %s26, 1
      %p248 = por %p246, %p247
      %p249 = scmp.ne.s32.totalorder %s240, %s241
      %p250 = scmp.eq.s32.totalorder %s26, 0
      %p251 = por %p249, %p250
      %p252 = scmp.ne.s32.totalorder %s240, %s241
      %p253 = scmp.eq.s32.totalorder %s27, 1
      %p254 = por %p252, %p253
      %p256 = scmp.ne.s32.totalorder %s241, %s255
      %p257 = scmp.eq.s32.totalorder %s27, 0
      %p258 = por %p256, %p257
      %s260 = sadd.s32 %s259, 1
      %p263 = scmp.eq.s32.totalorder %s21, 1
      %p264 = scmp.ne.s32.totalorder %s259, %s261
      %p265 = scmp.eq.s32.totalorder %s21, 0
      %p266 = por %p264, %p265
      %p267 = scmp.ne.s32.totalorder %s259, %s261
      %p268 = scmp.eq.s32.totalorder %s26, 1
      %p269 = por %p267, %p268
      %p270 = scmp.ne.s32.totalorder %s261, %s262
      %p271 = scmp.eq.s32.totalorder %s26, 0
      %p272 = por %p270, %p271
      %p273 = scmp.ne.s32.totalorder %s261, %s262
      %p274 = scmp.eq.s32.totalorder %s27, 1
      %p275 = por %p273, %p274
      %p277 = scmp.ne.s32.totalorder %s262, %s276
      %p278 = scmp.eq.s32.totalorder %s27, 0
      %p279 = por %p277, %p278
      %s280 = ssub.s32 %s21, %s28
      %p281 = scmp.eq.s32.totalorder %s280, 0
      %s283 = sadd.s32 %s282, 1
      %s284 = scalar_select %p281, %s282, %s283
      %p287 = pneg %p281
      %p288 = scmp.eq.s32.totalorder %s21, 1
      %p289 = por %p287, %p288
      %p290 = scmp.ne.s32.totalorder %s282, %s285
      %p291 = scmp.eq.s32.totalorder %s21, 0
      %p292 = por %p290, %p291
      %p293 = scmp.ne.s32.totalorder %s282, %s285
      %p294 = scmp.eq.s32.totalorder %s26, 1
      %p295 = por %p293, %p294
      %p296 = scmp.ne.s32.totalorder %s285, %s286
      %p297 = scmp.eq.s32.totalorder %s26, 0
      %p298 = por %p296, %p297
      %p299 = scmp.ne.s32.totalorder %s285, %s286
      %p300 = scmp.eq.s32.totalorder %s27, 1
      %p301 = por %p299, %p300
      %p303 = scmp.ne.s32.totalorder %s286, %s302
      %p304 = scmp.eq.s32.totalorder %s27, 0
      %p305 = por %p303, %p304
      %p306 = scmp.le.s32.totalorder 1, %s21
      %p307 = scmp.lt.s32.totalorder %s21, 3
      %p308 = pnand %p306, %p307
      %p309 = pneg %p308
      // Predicated region
      $region9: #{tpu_custom_call.1} parent=5 // pred_check
        _
      $region10: #{tpu_custom_call.1} parent=5 // pred_check_branch
        %311 = sbr.rel (%p308) target = $region12
      $region11: #{tpu_custom_call.1} parent=5 // pred_region
        %s312 = ssub.s32 %s21, 1
        // Predicated region
        $region13: #{tpu_custom_call.1} parent=11 // pred_check
          %p313 = pneg %p146
        $region14: #{tpu_custom_call.1} parent=11 // pred_check_branch
          %315 = sbr.rel (%p313) target = $region16
        $region15: #{tpu_custom_call.1} parent=11 // pred_region
          %s317 = ssub.s32 16, 16
          %318 = vsyncadd [#allocation5], %s317
          %s320 = sshll.u32 [#allocation4], 4
          %s321 = int_to_ptr.vmem [resolvable:$true] %s320
          %323 = dma.hbm_to_vmem [thread:$0]  %s4, 16, %s321, [#allocation5]
        $region16: #{tpu_custom_call.1} parent=11 // pred_fallthru
          _
        // Predicated region
        $region17: #{tpu_custom_call.1} parent=11 // pred_check
          %p324 = pneg %p167
        $region18: #{tpu_custom_call.1} parent=11 // pred_check_branch
          %326 = sbr.rel (%p324) target = $region20
        $region19: #{tpu_custom_call.1} parent=11 // pred_region
          %s328 = ssub.s32 1536, 1536
          %329 = vsyncadd [#allocation5], %s328
          %s330 = sshll.u32 [#allocation6], 4
          %s331 = int_to_ptr.vmem [resolvable:$true] %s330
          %336 = dma.hbm_to_vmem [thread:$0]  %s5, 1536, %s331, [#allocation5], 128, 128, 8
        $region20: #{tpu_custom_call.1} parent=11 // pred_fallthru
          _
        // Predicated region
        $region21: #{tpu_custom_call.1} parent=11 // pred_check
          %p337 = pneg %p188
        $region22: #{tpu_custom_call.1} parent=11 // pred_check_branch
          %339 = sbr.rel (%p337) target = $region24
        $region23: #{tpu_custom_call.1} parent=11 // pred_region
          _
        $region24: #{tpu_custom_call.1} parent=11 // pred_fallthru
          _
        // Predicated region
        $region25: #{tpu_custom_call.1} parent=11 // pred_check
          %p340 = pneg %p209
        $region26: #{tpu_custom_call.1} parent=11 // pred_check_branch
          %342 = sbr.rel (%p340) target = $region28
        $region27: #{tpu_custom_call.1} parent=11 // pred_region
          _
        $region28: #{tpu_custom_call.1} parent=11 // pred_fallthru
          _
        // Predicated region
        $region29: #{tpu_custom_call.1} parent=11 // pred_check
          %p343 = pneg %p230
        $region30: #{tpu_custom_call.1} parent=11 // pred_check_branch
          %345 = sbr.rel (%p343) target = $region32
        $region31: #{tpu_custom_call.1} parent=11 // pred_region
          _
        $region32: #{tpu_custom_call.1} parent=11 // pred_fallthru
          _
        // Predicated region
        $region33: #{tpu_custom_call.1} parent=11 // pred_check
          %p346 = pneg %p251
        $region34: #{tpu_custom_call.1} parent=11 // pred_check_branch
          %348 = sbr.rel (%p346) target = $region36
        $region35: #{tpu_custom_call.1} parent=11 // pred_region
          _
        $region36: #{tpu_custom_call.1} parent=11 // pred_fallthru
          _
        // Predicated region
        $region37: #{tpu_custom_call.1} parent=11 // pred_check
          %p349 = pneg %p272
        $region38: #{tpu_custom_call.1} parent=11 // pred_check_branch
          %351 = sbr.rel (%p349) target = $region40
        $region39: #{tpu_custom_call.1} parent=11 // pred_region
          _
        $region40: #{tpu_custom_call.1} parent=11 // pred_fallthru
          _
      $region12: #{tpu_custom_call.1} parent=5 // pred_fallthru
        _
      %p352 = scmp.lt.s32.totalorder %s21, 2
      // Predicated region
      $region41: #{tpu_custom_call.1} parent=5 // pred_check
        %p353 = pneg %p352
      $region42: #{tpu_custom_call.1} parent=5 // pred_check_branch
        %355 = sbr.rel (%p353) target = $region44
      $region43: #{tpu_custom_call.1} parent=5 // pred_region
        // Predicated region
        $region45: #{tpu_custom_call.1} parent=43 // pred_check
          %p356 = pneg %p41
        $region46: #{tpu_custom_call.1} parent=43 // pred_check_branch
          %358 = sbr.rel (%p356) target = $region48
        $region47: #{tpu_custom_call.1} parent=43 // pred_region
          %p359 = scmp.lt.s32.totalorder %s21, 1
          %s360 = scalar_select %p359, %s21, 1
          %s361 = smul.addr %s360, 8
          %s362 = scalar_lea.vmem %s0, %s361
        $region48: #{tpu_custom_call.1} parent=43 // pred_fallthru
          _
        // Predicated region
        $region49: #{tpu_custom_call.1} parent=43 // pred_check
          %p363 = pneg %p67
        $region50: #{tpu_custom_call.1} parent=43 // pred_check_branch
          %365 = sbr.rel (%p363) target = $region52
        $region51: #{tpu_custom_call.1} parent=43 // pred_region
          %p366 = scmp.lt.s32.totalorder %s21, 1
          %s367 = scalar_select %p366, %s21, 1
          %s368 = smul.addr %s367, 8
          %s369 = scalar_lea.vmem %s1, %s368
        $region52: #{tpu_custom_call.1} parent=43 // pred_fallthru
          _
        // Predicated region
        $region53: #{tpu_custom_call.1} parent=43 // pred_check
          %p370 = pneg %p93
        $region54: #{tpu_custom_call.1} parent=43 // pred_check_branch
          %372 = sbr.rel (%p370) target = $region56
        $region55: #{tpu_custom_call.1} parent=43 // pred_region
          %s373 = sand.u32 %s83, 1
          %s374 = scalar_lea.sflag [#allocation3], %s373
          %s375 = sand.u32 %s83, 1
          %s376 = smul.addr %s375, 8
          %s377 = scalar_lea.vmem [#allocation2], %s376
          %s379 = ssub.s32 128, 128
          %380 = vsyncadd %s374, %s379
          %s381 = smul.addr %s21, 128
          %s382 = scalar_lea.hbm %s2, %s381
          %s384 = sshll.u32 %s377, 4
          %s385 = int_to_ptr.vmem [resolvable:$true] %s384
          %387 = dma.hbm_to_vmem [thread:$0]  %s382, 128, %s385, %s374
        $region56: #{tpu_custom_call.1} parent=43 // pred_fallthru
          _
        // Predicated region
        $region57: #{tpu_custom_call.1} parent=43 // pred_check
          %p388 = pneg %p119
        $region58: #{tpu_custom_call.1} parent=43 // pred_check_branch
          %390 = sbr.rel (%p388) target = $region60
        $region59: #{tpu_custom_call.1} parent=43 // pred_region
          %p391 = scmp.lt.s32.totalorder %s21, 1
          %s392 = scalar_select %p391, %s21, 1
          %s393 = smul.addr %s392, 8
          %s394 = scalar_lea.vmem %s3, %s393
        $region60: #{tpu_custom_call.1} parent=43 // pred_fallthru
          _
      $region44: #{tpu_custom_call.1} parent=5 // pred_fallthru
        _
      %p395 = scmp.le.s32.totalorder 1, %s21
      %p396 = scmp.lt.s32.totalorder %s21, 3
      %p397 = pnand %p395, %p396
      %p398 = pneg %p397
      // Predicated region
      $region61: #{tpu_custom_call.1} parent=5 // pred_check
        _
      $region62: #{tpu_custom_call.1} parent=5 // pred_check_branch
        %400 = sbr.rel (%p397) target = $region64
      $region63: #{tpu_custom_call.1} parent=5 // pred_region
        %s401 = ssub.s32 %s21, 1
        %s402 = sand.u32 %s86, 1
        %s403 = scalar_lea.sflag [#allocation3], %s402
        %s404 = sand.u32 %s86, 1
        %s405 = smul.addr %s404, 8
        %s406 = scalar_lea.vmem [#allocation2], %s405
        // Predicated region
        $region65: #{tpu_custom_call.1} parent=63 // pred_check
          %p407 = pneg %p99
        $region66: #{tpu_custom_call.1} parent=63 // pred_check_branch
          %409 = sbr.rel (%p407) target = $region68
        $region67: #{tpu_custom_call.1} parent=63 // pred_region
          %410 = dma.done %s403, 128
        $region68: #{tpu_custom_call.1} parent=63 // pred_fallthru
          _
        // Predicated region
        $region69: #{tpu_custom_call.1} parent=63 // pred_check
          %p411 = pneg %p146
        $region70: #{tpu_custom_call.1} parent=63 // pred_check_branch
          %413 = sbr.rel (%p411) target = $region72
        $region71: #{tpu_custom_call.1} parent=63 // pred_region
          %414 = dma.done [#allocation5], 16
        $region72: #{tpu_custom_call.1} parent=63 // pred_fallthru
          _
        // Predicated region
        $region73: #{tpu_custom_call.1} parent=63 // pred_check
          %p415 = pneg %p167
        $region74: #{tpu_custom_call.1} parent=63 // pred_check_branch
          %417 = sbr.rel (%p415) target = $region76
        $region75: #{tpu_custom_call.1} parent=63 // pred_region
          %418 = dma.done [#allocation5], 1536
        $region76: #{tpu_custom_call.1} parent=63 // pred_fallthru
          _
        %p419 = scmp.lt.s32.totalorder %s26, 1
        %s420 = scalar_select %p419, %s26, 1
        %s421 = smul.addr %s420, 8
        %s422 = scalar_lea.vmem %s0, %s421
        %p423 = pneg %p47
        %p424 = pneg %p44
        %p425 = scmp.lt.s32.totalorder %s26, 1
        %s426 = scalar_select %p425, %s26, 1
        %s427 = smul.addr %s426, 8
        %s428 = scalar_lea.vmem %s1, %s427
        %p429 = pneg %p73
        %p430 = pneg %p70
        %s431 = sand.u32 %s86, 1
        %s432 = scalar_lea.sflag [#allocation3], %s431
        %s433 = sand.u32 %s86, 1
        %s434 = smul.addr %s433, 8
        %s435 = scalar_lea.vmem [#allocation2], %s434
        %p436 = pneg %p99
        %p437 = pneg %p96
        %p438 = scmp.lt.s32.totalorder %s26, 1
        %s439 = scalar_select %p438, %s26, 1
        %s440 = smul.addr %s439, 8
        %s441 = scalar_lea.vmem %s3, %s440
        %p442 = pneg %p125
        %p443 = pneg %p122
        %p444 = pneg %p146
        %p445 = pneg %p143
        %p446 = pneg %p167
        %p447 = pneg %p164
        %p448 = pneg %p188
        %p449 = pneg %p185
        %p450 = pneg %p209
        %p451 = pneg %p206
        %p452 = pneg %p230
        %p453 = pneg %p227
        %p454 = pneg %p251
        %p455 = pneg %p248
        %p456 = pneg %p272
        %p457 = pneg %p269
        %p458 = pneg %p298
        %p459 = pneg %p295
        %p460 = scmp.lt.s32.totalorder %s26, 1
        %s461 = scalar_select %p460, %s26, 1
        %s462 = smul.addr %s461, 8
        %s463 = scalar_lea.vmem %s11, %s462
        %p464 = scmp.lt.s32.totalorder %s26, 1
        %s465 = scalar_select %p464, %s26, 1
        %s466 = smul.addr %s465, 8
        %s467 = scalar_lea.vmem %s0, %s466
        %p468 = scmp.lt.s32.totalorder %s26, 1
        %s469 = scalar_select %p468, %s26, 1
        %s470 = smul.addr %s469, 8
        %s471 = scalar_lea.vmem %s1, %s470
        %p472 = scmp.lt.s32.totalorder %s26, 1
        %s473 = scalar_select %p472, %s26, 1
        %s474 = smul.addr %s473, 8
        %s475 = scalar_lea.vmem %s3, %s474
        %p476 = scmp.lt.s32.totalorder %s26, 1
        %s477 = scalar_select %p476, %s26, 1
        %s478 = smul.addr %s477, 8
        %s479 = scalar_lea.vmem %s11, %s478
        %v480 = vld [vmem:[%s475] sm:$0xff]
        %v481 = vld [vmem:[#allocation4] sm:$0x1]
        %483 = vset.pattern.permute.xlu0 0
        %484 = vperm.xlu0 %483, %v480
        %v485 = vpop.permute.xlu0 %484
        %v488 = vlaneseq
        %v489 = vshrl.u32 %v488, 7
        %v490 = vsub.s32 0, %v489
        %v491 = vrot.slane %v481, %v490
        %v493 = vmul.f32 %v485, %v491
        %v494 = vand.u32 2147483647, %v493
        %vm495 = vcmp.le.f32.partialorder %v494, 0.7853982
        %vm496 = vcmp.lt.s32.totalorder %v493, 0
        %v497 = vand.u32 %v493, 2139095040
        %v498 = vshrl.u32 %v497, 23
        %v499 = vsub.s32 %v498, 127
        %v500 = vand.u32 2147483647, %v493
        %v501 = vand.u32 %v500, 8388607
        %v502 = vor.u32 %v501, 8388608
        %v503 = vsub.s32 0, %v502
        %v504 = vadd.s32 %v499, 1
        %vm505 = vcmp.gt.s32.totalorder %v504, 0
        %v506 = vsel %vm505, %v504, 0
        %v507 = vshrl.u32 %v506, 5
        %v508 = vand.u32 %v506, 31
        %v509 = vsub.s32 32, %v508
        %v510 = vshrl.u32 683565275, %v509
        %v511 = vshll.u32 683565275, %v508
        %v512 = vshrl.u32 2475754826, %v509
        %v513 = vor.u32 %v511, %v512
        %v514 = vshll.u32 2475754826, %v508
        %v515 = vshrl.u32 2131351028, %v509
        %v516 = vor.u32 %v514, %v515
        %v517 = vshll.u32 2131351028, %v508
        %v518 = vshrl.u32 2102212464, %v509
        %v519 = vor.u32 %v517, %v518
        %v520 = vshll.u32 2102212464, %v508
        %v521 = vshrl.u32 920167782, %v509
        %v522 = vor.u32 %v520, %v521
        %v523 = vshll.u32 920167782, %v508
        %v524 = vshrl.u32 1326507024, %v509
        %v525 = vor.u32 %v523, %v524
        %vm526 = vcmp.lt.s32.totalorder %v507, 1
        %vm527 = vcmp.lt.s32.totalorder %v507, 2
        %vm528 = vcmp.lt.s32.totalorder %v507, 3
        %vm529 = vcmp.lt.s32.totalorder %v507, 4
        %v530 = vsel %vm526, %v510, %v513
        %v531 = vsel %vm529, %v519, 2102212464
        %v532 = vsel %vm528, %v516, %v531
        %v533 = vsel %vm527, %v530, %v532
        %v534 = vsel %vm526, %v513, %v516
        %v535 = vsel %vm529, %v522, 920167782
        %v536 = vsel %vm528, %v519, %v535
        %v537 = vsel %vm527, %v534, %v536
        %v538 = vsel %vm526, %v516, %v519
        %v539 = vsel %vm529, %v525, 1326507024
        %v540 = vsel %vm528, %v522, %v539
        %v541 = vsel %vm527, %v538, %v540
        %v542 = vshll.u32 %v502, 8
        %v543 = vmul.u32.u64.compose %v542, %v541
        %v544 = vextract.low.u32 %v543
        %v545 = vextract.high.u32 %v543
        %v546 = vmul.u32.u64.compose %v542, %v537
        %v547 = vextract.low.u32 %v546
        %v548 = vextract.high.u32 %v546
        %v549 = vmul.u32 %v542, %v533
        %v550 = vadd.s32 %v545, %v547
        %vm551 = vc.u32 %v545, %v547
        %v552 = vadd.s32 %v548, 1
        %v553 = vsel %vm551, %v552, %v548
        %v554 = vadd.s32 %v549, %v553
        %v555 = vadd.s32 %v554, 536870912
        %v556 = vshrl.u32 %v555, 30
        %v557 = vshll.u32 %v556, 30
        %v558 = vsub.s32 %v554, %v557
        %vm559 = vcmp.lt.s32.totalorder %v558, 0
        %v560 = vsub.s32 0, %v558
        %v561 = vsel %vm559, %v560, %v558
        %v562 = vclz %v561
        %v563 = vsub.s32 %v562, 2
        %vm564 = vcmp.gt.s32.totalorder 0, %v563
        %v565 = vsel %vm564, 0, %v563
        %v566 = vsub.s32 32, %v565
        %v567 = vshll.u32 %v558, %v565
        %v568 = vshrl.u32 %v550, %v566
        %v569 = vor.u32 %v567, %v568
        %v570 = vsub.s32 4294967266, %v565
        %v571 = vadd.s32 %v570, 127
        %v572 = vshll.u32 %v571, 23
        %v573 = vor.u32 4788187, %v572
        %v574 = vand.u32 2147483647, %v573
        %v576 = vcvt.s32.f32 %v569
        %v577 = vmul.f32 %v576, %v574
        %v578 = vxor.u32 %v577, 2147483648
        %v579 = vsel %vm496, %v578, %v577
        %v580 = vsub.s32 4, %v556
        %v581 = vsel %vm496, %v580, %v556
        %v582 = vsel %vm495, %v493, %v579
        %v583 = vsel %vm495, 0, %v581
        %v584 = vcosq.f32.pop %v582
        %v585 = vsinq.f32.pop %v582
        %vm586 = vweird.f32 %v493
        %v587 = vadd.s32 %v583, 3
        %v588 = vand.u32 %v587, 3
        %vm589 = vcmp.lt.s32.totalorder %v588, 2
        %vm590 = vcmp.eq.s32.totalorder %v588, 0
        %v591 = vxor.u32 %v585, 2147483648
        %v592 = vsel %vm590, %v584, %v591
        %vm593 = vcmp.eq.s32.totalorder %v588, 2
        %v594 = vxor.u32 %v584, 2147483648
        %v595 = vsel %vm593, %v594, %v585
        %v596 = vsel %vm589, %v592, %v595
        %v597 = vsel %vm586, nan, %v596
        %v598 = vand.u32 2147483647, %v493
        %vm599 = vcmp.le.f32.partialorder %v598, 0.7853982
        %vm600 = vcmp.lt.s32.totalorder %v493, 0
        %v601 = vand.u32 %v493, 2139095040
        %v602 = vshrl.u32 %v601, 23
        %v603 = vsub.s32 %v602, 127
        %v604 = vand.u32 2147483647, %v493
        %v605 = vand.u32 %v604, 8388607
        %v606 = vor.u32 %v605, 8388608
        %v607 = vsub.s32 0, %v606
        %v608 = vadd.s32 %v603, 1
        %vm609 = vcmp.gt.s32.totalorder %v608, 0
        %v610 = vsel %vm609, %v608, 0
        %v611 = vshrl.u32 %v610, 5
        %v612 = vand.u32 %v610, 31
        %v613 = vsub.s32 32, %v612
        %v614 = vshrl.u32 683565275, %v613
        %v615 = vshll.u32 683565275, %v612
        %v616 = vshrl.u32 2475754826, %v613
        %v617 = vor.u32 %v615, %v616
        %v618 = vshll.u32 2475754826, %v612
        %v619 = vshrl.u32 2131351028, %v613
        %v620 = vor.u32 %v618, %v619
        %v621 = vshll.u32 2131351028, %v612
        %v622 = vshrl.u32 2102212464, %v613
        %v623 = vor.u32 %v621, %v622
        %v624 = vshll.u32 2102212464, %v612
        %v625 = vshrl.u32 920167782, %v613
        %v626 = vor.u32 %v624, %v625
        %v627 = vshll.u32 920167782, %v612
        %v628 = vshrl.u32 1326507024, %v613
        %v629 = vor.u32 %v627, %v628
        %vm630 = vcmp.lt.s32.totalorder %v611, 1
        %vm631 = vcmp.lt.s32.totalorder %v611, 2
        %vm632 = vcmp.lt.s32.totalorder %v611, 3
        %vm633 = vcmp.lt.s32.totalorder %v611, 4
        %v634 = vsel %vm630, %v614, %v617
        %v635 = vsel %vm633, %v623, 2102212464
        %v636 = vsel %vm632, %v620, %v635
        %v637 = vsel %vm631, %v634, %v636
        %v638 = vsel %vm630, %v617, %v620
        %v639 = vsel %vm633, %v626, 920167782
        %v640 = vsel %vm632, %v623, %v639
        %v641 = vsel %vm631, %v638, %v640
        %v642 = vsel %vm630, %v620, %v623
        %v643 = vsel %vm633, %v629, 1326507024
        %v644 = vsel %vm632, %v626, %v643
        %v645 = vsel %vm631, %v642, %v644
        %v646 = vshll.u32 %v606, 8
        %v647 = vmul.u32.u64.compose %v646, %v645
        %v648 = vextract.low.u32 %v647
        %v649 = vextract.high.u32 %v647
        %v650 = vmul.u32.u64.compose %v646, %v641
        %v651 = vextract.low.u32 %v650
        %v652 = vextract.high.u32 %v650
        %v653 = vmul.u32 %v646, %v637
        %v654 = vadd.s32 %v649, %v651
        %vm655 = vc.u32 %v649, %v651
        %v656 = vadd.s32 %v652, 1
        %v657 = vsel %vm655, %v656, %v652
        %v658 = vadd.s32 %v653, %v657
        %v659 = vadd.s32 %v658, 536870912
        %v660 = vshrl.u32 %v659, 30
        %v661 = vshll.u32 %v660, 30
        %v662 = vsub.s32 %v658, %v661
        %vm663 = vcmp.lt.s32.totalorder %v662, 0
        %v664 = vsub.s32 0, %v662
        %v665 = vsel %vm663, %v664, %v662
        %v666 = vclz %v665
        %v667 = vsub.s32 %v666, 2
        %vm668 = vcmp.gt.s32.totalorder 0, %v667
        %v669 = vsel %vm668, 0, %v667
        %v670 = vsub.s32 32, %v669
        %v671 = vshll.u32 %v662, %v669
        %v672 = vshrl.u32 %v654, %v670
        %v673 = vor.u32 %v671, %v672
        %v674 = vsub.s32 4294967266, %v669
        %v675 = vadd.s32 %v674, 127
        %v676 = vshll.u32 %v675, 23
        %v677 = vor.u32 4788187, %v676
        %v678 = vand.u32 2147483647, %v677
        %v680 = vcvt.s32.f32 %v673
        %v681 = vmul.f32 %v680, %v678
        %v682 = vxor.u32 %v681, 2147483648
        %v683 = vsel %vm600, %v682, %v681
        %v684 = vsub.s32 4, %v660
        %v685 = vsel %vm600, %v684, %v660
        %v686 = vsel %vm599, %v493, %v683
        %v687 = vsel %vm599, 0, %v685
        %v688 = vcosq.f32.pop %v686
        %v689 = vsinq.f32.pop %v686
        %vm690 = vweird.f32 %v493
        %v691 = vand.u32 %v687, 3
        %vm692 = vcmp.lt.s32.totalorder %v691, 2
        %vm693 = vcmp.eq.s32.totalorder %v691, 0
        %v694 = vxor.u32 %v689, 2147483648
        %v695 = vsel %vm693, %v688, %v694
        %vm696 = vcmp.eq.s32.totalorder %v691, 2
        %v697 = vxor.u32 %v688, 2147483648
        %v698 = vsel %vm696, %v697, %v689
        %v699 = vsel %vm692, %v695, %v698
        %v700 = vsel %vm690, nan, %v699
        %v701 = vld [vmem:[%s467] sm:$0xff]
        %v702 = vld [vmem:[%s471] sm:$0xff]
        %v703 = vld [vmem:[%s406] sm:$0xff]
        %705 = vrot.lane.b32.xlu0 %v702, 32
        %v706 = vpop.permute.xlu0 %705
        %709 = vrot.lane.b32.xlu0 %v703, 64
        %v710 = vpop.permute.xlu0 %709
        %713 = vrot.lane.b32.xlu0 %v597, 80
        %v714 = vpop.permute.xlu0 %713
        %717 = vrot.lane.b32.xlu0 %v700, 88
        %v718 = vpop.permute.xlu0 %717
        %vm720 = vcmask 261120
        %v721 = vsel %vm720, %v701, %v706
        %vm722 = vcmask 523264
        %v723 = vsel %vm722, %v721, %v710
        %vm724 = vcmask 654336
        %v725 = vsel %vm724, %v723, %v714
        %vm726 = vcmask 719872
        %v727 = vsel %vm726, %v725, %v718
        %v728 = vld [vmem:[#allocation6] sm:$0xff]
        %v729 = vld [vmem:[#allocation6 + $0x8] sm:$0xff]
        %v730 = vld [vmem:[#allocation6 + $0x10] sm:$0xff]
        %v731 = vld [vmem:[#allocation6 + $0x18] sm:$0xff]
        %v732 = vld [vmem:[#allocation6 + $0x20] sm:$0xff]
        %v733 = vld [vmem:[#allocation6 + $0x28] sm:$0xff]
        %v734 = vld [vmem:[#allocation6 + $0x30] sm:$0xff]
        %v735 = vld [vmem:[#allocation6 + $0x38] sm:$0xff]
        %v736 = vld [vmem:[#allocation6 + $0x40] sm:$0xff]
        %v737 = vld [vmem:[#allocation6 + $0x48] sm:$0xff]
        %v738 = vld [vmem:[#allocation6 + $0x50] sm:$0xff]
        %v739 = vld [vmem:[#allocation6 + $0x58] sm:$0xff]
        %v740 = vld [vmem:[%s6] sm:$0x1]
        %v742 = vlaneseq
        %v743 = vshrl.u32 %v742, 7
        %v744 = vsub.s32 0, %v743
        %v745 = vrot.slane %v740, %v744
        %vm747 = vcmask 785408
        %v749 = vsel %vm747, %v727, 0
        %751 = vmatprep.subr.mxu0 0.0
        %752 = vmatpush1.msra.mxu0 %v728
        %753 = vmatprep.subr.mxu0 0.0
        %754 = vmatpush1.msra.mxu0 %v729
        %755 = vmatprep.subr.mxu0 0.0
        %756 = vmatpush1.msra.mxu0 %v730
        %757 = vmatprep.subr.mxu0 0.0
        %758 = vmatpush1.msra.mxu0 %v731
        %759 = vmatprep.subr.mxu0 0.0
        %760 = vmatpush1.msra.mxu0 %v732
        %761 = vmatprep.subr.mxu0 0.0
        %762 = vmatpush1.msra.mxu0 %v733
        %763 = vmatprep.subr.mxu0 0.0
        %764 = vmatpush1.msra.mxu0 %v734
        %765 = vmatprep.subr.mxu0 0.0
        %766 = vmatpush1.msra.mxu0 %v735
        %767 = vmatprep.subr.mxu0 0.0
        %768 = vmatpush1.msra.mxu0 %v736
        %769 = vmatprep.subr.mxu0 0.0
        %770 = vmatpush1.msra.mxu0 %v737
        %771 = vmatprep.subr.mxu0 0.0
        %772 = vmatpush1.msra.mxu0 %v738
        %773 = vmatprep.subr.mxu0 0.0
        %774 = vmatpush1.msra.mxu0 %v739
        %775 = vmatprep.subr.mxu0 0.0
        %776 = vmatpush1.msra.mxu0 0.0
        %777 = vmatprep.subr.mxu0 0.0
        %778 = vmatpush1.msra.mxu0 0.0
        %779 = vmatprep.subr.mxu0 0.0
        %780 = vmatpush1.msra.mxu0 0.0
        %781 = vmatprep.subr.mxu0 0.0
        %782 = vmatpush1.msra.mxu0 0.0
        %783 = vmatprep.subr.mxu0 0.0
        %784 = vmatpush1.msra.mxu0 0.0
        %785 = vmatprep.subr.mxu0 0.0
        %786 = vmatpush1.msra.mxu0 0.0
        %787 = vmatprep.subr.mxu0 0.0
        %788 = vmatpush1.msra.mxu0 0.0
        %789 = vmatprep.subr.mxu0 0.0
        %790 = vmatpush1.msra.mxu0 0.0
        %791 = vmatprep.subr.mxu0 0.0
        %792 = vmatpush1.msra.mxu0 0.0
        %793 = vmatprep.subr.mxu0 0.0
        %794 = vmatpush1.msra.mxu0 0.0
        %795 = vmatprep.subr.mxu0 0.0
        %796 = vmatpush1.msra.mxu0 0.0
        %797 = vmatprep.subr.mxu0 0.0
        %798 = vmatpush1.msra.mxu0 0.0
        %799 = vmatprep.subr.mxu0 0.0
        %800 = vmatpush1.msra.mxu0 0.0
        %801 = vmatprep.subr.mxu0 0.0
        %802 = vmatpush1.msra.mxu0 0.0
        %803 = vmatprep.subr.mxu0 0.0
        %804 = vmatpush1.msra.mxu0 0.0
        %805 = vmatprep.subr.mxu0 0.0
        %806 = vmatpush1.msra.mxu0 0.0
        %807 = vmatprep.subr.mxu0 0.0
        %808 = vmatpush1.msra.mxu0 0.0
        %809 = vmatprep.subr.mxu0 0.0
        %810 = vmatpush1.msra.mxu0 0.0
        %811 = vmatprep.subr.mxu0 0.0
        %812 = vmatpush1.msra.mxu0 0.0
        %813 = vmatprep.subr.mxu0 0.0
        %814 = vmatpush1.msra.mxu0 0.0
        %815 = vmatprep.mubr.f32.mxu0 0.0
        %816 = vmatmul.mubr.f32.gmra.mrb[0].mxu0 %v749
        %v817 = vpop.f32.mrb[0].mxu0
        %v818 = vadd.f32 %v745, %v817
        %v819 = vpop.f32.mrb[0].mxu0
        %820 = vdwg.mxu0
        %822 = vrot.lane.b32.xlu0 %v818, 96
        %v823 = vpop.permute.xlu0 %822
        %v825 = vmul.f32 %v818, %v823
        %v826 = vsel %vm720, %v825, 0.0
        %827 = vadd.xlane.f32.xlu0 %v826
        %v828 = vpop.xlane.xlu0 %827
        %v829 = vxor.u32 %v828, 2147483648
        %v830 = vmul.f32 %v829, 1.442695
        %v831 = vpow.pop %v830
        %v832 = vadd.f32 %v831, 1.0
        %v833 = vrcp.pop %v832
        %v834 = vmul.f32 1.0, %v833
        %v835 = vmul.f32 %v834, %v818
        %v836 = vsub.f32 1.0, %v834
        %v837 = vmul.f32 %v836, %v818
        %839 = vrot.lane.b32.xlu0 %v837, 32
        %v840 = vpop.permute.xlu0 %839
        %v842 = vadd.f32 %v835, %v840
        %v843 = vadd.f32 %v842, %v823
        %v844 = vld [vmem:[%s7] sm:$0xff]
        %v845 = vld [vmem:[%s7 + $0x8] sm:$0xff]
        %v846 = vld [vmem:[%s7 + $0x10] sm:$0xff]
        %v847 = vld [vmem:[%s7 + $0x18] sm:$0xff]
        %v848 = vld [vmem:[%s8] sm:$0x1]
        %v850 = vlaneseq
        %v851 = vshrl.u32 %v850, 7
        %v852 = vsub.s32 0, %v851
        %v853 = vrot.slane %v848, %v852
        %856 = vrot.lane.b32.xlu0 %v843, 96
        %v857 = vpop.permute.xlu0 %856
        %v858 = vsel %vm720, %v857, 0
        %860 = vmatprep.subr.mxu0 0.0
        %861 = vmatpush1.msra.mxu0 %v844
        %862 = vmatprep.subr.mxu0 0.0
        %863 = vmatpush1.msra.mxu0 %v845
        %864 = vmatprep.subr.mxu0 0.0
        %865 = vmatpush1.msra.mxu0 %v846
        %866 = vmatprep.subr.mxu0 0.0
        %867 = vmatpush1.msra.mxu0 %v847
        %868 = vmatprep.subr.mxu0 0.0
        %869 = vmatpush1.msra.mxu0 0.0
        %870 = vmatprep.subr.mxu0 0.0
        %871 = vmatpush1.msra.mxu0 0.0
        %872 = vmatprep.subr.mxu0 0.0
        %873 = vmatpush1.msra.mxu0 0.0
        %874 = vmatprep.subr.mxu0 0.0
        %875 = vmatpush1.msra.mxu0 0.0
        %876 = vmatprep.subr.mxu0 0.0
        %877 = vmatpush1.msra.mxu0 0.0
        %878 = vmatprep.subr.mxu0 0.0
        %879 = vmatpush1.msra.mxu0 0.0
        %880 = vmatprep.subr.mxu0 0.0
        %881 = vmatpush1.msra.mxu0 0.0
        %882 = vmatprep.subr.mxu0 0.0
        %883 = vmatpush1.msra.mxu0 0.0
        %884 = vmatprep.subr.mxu0 0.0
        %885 = vmatpush1.msra.mxu0 0.0
        %886 = vmatprep.subr.mxu0 0.0
        %887 = vmatpush1.msra.mxu0 0.0
        %888 = vmatprep.subr.mxu0 0.0
        %889 = vmatpush1.msra.mxu0 0.0
        %890 = vmatprep.subr.mxu0 0.0
        %891 = vmatpush1.msra.mxu0 0.0
        %892 = vmatprep.subr.mxu0 0.0
        %893 = vmatpush1.msra.mxu0 0.0
        %894 = vmatprep.subr.mxu0 0.0
        %895 = vmatpush1.msra.mxu0 0.0
        %896 = vmatprep.subr.mxu0 0.0
        %897 = vmatpush1.msra.mxu0 0.0
        %898 = vmatprep.subr.mxu0 0.0
        %899 = vmatpush1.msra.mxu0 0.0
        %900 = vmatprep.subr.mxu0 0.0
        %901 = vmatpush1.msra.mxu0 0.0
        %902 = vmatprep.subr.mxu0 0.0
        %903 = vmatpush1.msra.mxu0 0.0
        %904 = vmatprep.subr.mxu0 0.0
        %905 = vmatpush1.msra.mxu0 0.0
        %906 = vmatprep.subr.mxu0 0.0
        %907 = vmatpush1.msra.mxu0 0.0
        %908 = vmatprep.subr.mxu0 0.0
        %909 = vmatpush1.msra.mxu0 0.0
        %910 = vmatprep.subr.mxu0 0.0
        %911 = vmatpush1.msra.mxu0 0.0
        %912 = vmatprep.subr.mxu0 0.0
        %913 = vmatpush1.msra.mxu0 0.0
        %914 = vmatprep.subr.mxu0 0.0
        %915 = vmatpush1.msra.mxu0 0.0
        %916 = vmatprep.subr.mxu0 0.0
        %917 = vmatpush1.msra.mxu0 0.0
        %918 = vmatprep.subr.mxu0 0.0
        %919 = vmatpush1.msra.mxu0 0.0
        %920 = vmatprep.subr.mxu0 0.0
        %921 = vmatpush1.msra.mxu0 0.0
        %922 = vmatprep.subr.mxu0 0.0
        %923 = vmatpush1.msra.mxu0 0.0
        %924 = vmatprep.mubr.f32.mxu0 0.0
        %925 = vmatmul.mubr.f32.gmra.mrb[0].mxu0 %v858
        %v926 = vpop.f32.mrb[0].mxu0
        %v927 = vadd.f32 %v853, %v926
        %v928 = vpop.f32.mrb[0].mxu0
        %929 = vdwg.mxu0
        %v930 = vmax.f32 %v927, 0.0
        %v931 = vld [vmem:[%s9] sm:$0xff]
        %v932 = vld [vmem:[%s9 + $0x8] sm:$0xff]
        %v933 = vld [vmem:[%s9 + $0x10] sm:$0xff]
        %v934 = vld [vmem:[%s9 + $0x18] sm:$0xff]
        %v935 = vld [vmem:[%s10] sm:$0x1]
        %v937 = vlaneseq
        %v938 = vshrl.u32 %v937, 7
        %v939 = vsub.s32 0, %v938
        %v940 = vrot.slane %v935, %v939
        %v943 = vsel %vm720, %v930, 0
        %945 = vmatprep.subr.mxu0 0.0
        %946 = vmatpush1.msra.mxu0 %v931
        %947 = vmatprep.subr.mxu0 0.0
        %948 = vmatpush1.msra.mxu0 %v932
        %949 = vmatprep.subr.mxu0 0.0
        %950 = vmatpush1.msra.mxu0 %v933
        %951 = vmatprep.subr.mxu0 0.0
        %952 = vmatpush1.msra.mxu0 %v934
        %953 = vmatprep.subr.mxu0 0.0
        %954 = vmatpush1.msra.mxu0 0.0
        %955 = vmatprep.subr.mxu0 0.0
        %956 = vmatpush1.msra.mxu0 0.0
        %957 = vmatprep.subr.mxu0 0.0
        %958 = vmatpush1.msra.mxu0 0.0
        %959 = vmatprep.subr.mxu0 0.0
        %960 = vmatpush1.msra.mxu0 0.0
        %961 = vmatprep.subr.mxu0 0.0
        %962 = vmatpush1.msra.mxu0 0.0
        %963 = vmatprep.subr.mxu0 0.0
        %964 = vmatpush1.msra.mxu0 0.0
        %965 = vmatprep.subr.mxu0 0.0
        %966 = vmatpush1.msra.mxu0 0.0
        %967 = vmatprep.subr.mxu0 0.0
        %968 = vmatpush1.msra.mxu0 0.0
        %969 = vmatprep.subr.mxu0 0.0
        %970 = vmatpush1.msra.mxu0 0.0
        %971 = vmatprep.subr.mxu0 0.0
        %972 = vmatpush1.msra.mxu0 0.0
        %973 = vmatprep.subr.mxu0 0.0
        %974 = vmatpush1.msra.mxu0 0.0
        %975 = vmatprep.subr.mxu0 0.0
        %976 = vmatpush1.msra.mxu0 0.0
        %977 = vmatprep.subr.mxu0 0.0
        %978 = vmatpush1.msra.mxu0 0.0
        %979 = vmatprep.subr.mxu0 0.0
        %980 = vmatpush1.msra.mxu0 0.0
        %981 = vmatprep.subr.mxu0 0.0
        %982 = vmatpush1.msra.mxu0 0.0
        %983 = vmatprep.subr.mxu0 0.0
        %984 = vmatpush1.msra.mxu0 0.0
        %985 = vmatprep.subr.mxu0 0.0
        %986 = vmatpush1.msra.mxu0 0.0
        %987 = vmatprep.subr.mxu0 0.0
        %988 = vmatpush1.msra.mxu0 0.0
        %989 = vmatprep.subr.mxu0 0.0
        %990 = vmatpush1.msra.mxu0 0.0
        %991 = vmatprep.subr.mxu0 0.0
        %992 = vmatpush1.msra.mxu0 0.0
        %993 = vmatprep.subr.mxu0 0.0
        %994 = vmatpush1.msra.mxu0 0.0
        %995 = vmatprep.subr.mxu0 0.0
        %996 = vmatpush1.msra.mxu0 0.0
        %997 = vmatprep.subr.mxu0 0.0
        %998 = vmatpush1.msra.mxu0 0.0
        %999 = vmatprep.subr.mxu0 0.0
        %1000 = vmatpush1.msra.mxu0 0.0
        %1001 = vmatprep.subr.mxu0 0.0
        %1002 = vmatpush1.msra.mxu0 0.0
        %1003 = vmatprep.subr.mxu0 0.0
        %1004 = vmatpush1.msra.mxu0 0.0
        %1005 = vmatprep.subr.mxu0 0.0
        %1006 = vmatpush1.msra.mxu0 0.0
        %1007 = vmatprep.subr.mxu0 0.0
        %1008 = vmatpush1.msra.mxu0 0.0
        %1009 = vmatprep.mubr.f32.mxu0 0.0
        %1010 = vmatmul.mubr.f32.gmra.mrb[0].mxu0 %v943
        %v1011 = vpop.f32.mrb[0].mxu0
        %v1012 = vadd.f32 %v940, %v1011
        %v1013 = vpop.f32.mrb[0].mxu0
        %1014 = vdwg.mxu0
        %vm1015 = vcmask 31744
        %1016 = vst.msk [vmem:[%s479] sm:$0xff] %vm1015, %v1012
        %vm1017 = vcmask 39968
        %1018 = vst.msk [vmem:[%s479] sm:$0xff] %vm1017, %v834
        %p1019 = scmp.lt.s32.totalorder %s26, 1
        %s1020 = scalar_select %p1019, %s26, 1
        %s1021 = smul.addr %s1020, 8
        %s1022 = scalar_lea.vmem %s11, %s1021
        // Predicated region
        $region77: #{tpu_custom_call.1} parent=63 // pred_check
          %p1023 = pneg %p295
        $region78: #{tpu_custom_call.1} parent=63 // pred_check_branch
          %1025 = sbr.rel (%p1023) target = $region80
        $region79: #{tpu_custom_call.1} parent=63 // pred_region
          _
        $region80: #{tpu_custom_call.1} parent=63 // pred_fallthru
          _
      $region64: #{tpu_custom_call.1} parent=5 // pred_fallthru
        _
      %p1026 = scmp.le.s32.totalorder 2, %s21
      // Predicated region
      $region81: #{tpu_custom_call.1} parent=5 // pred_check
        %p1027 = pneg %p1026
      $region82: #{tpu_custom_call.1} parent=5 // pred_check_branch
        %1029 = sbr.rel (%p1027) target = $region84
      $region83: #{tpu_custom_call.1} parent=5 // pred_region
        %s1030 = ssub.s32 %s21, 2
        // Predicated region
        $region85: #{tpu_custom_call.1} parent=83 // pred_check
          %p1031 = pneg %p301
        $region86: #{tpu_custom_call.1} parent=83 // pred_check_branch
          %1033 = sbr.rel (%p1031) target = $region88
        $region87: #{tpu_custom_call.1} parent=83 // pred_region
          %p1034 = scmp.lt.s32.totalorder %s27, 1
          %s1035 = scalar_select %p1034, %s27, 1
          %s1036 = smul.addr %s1035, 8
          %s1037 = scalar_lea.vmem %s11, %s1036
        $region88: #{tpu_custom_call.1} parent=83 // pred_fallthru
          _
      $region84: #{tpu_custom_call.1} parent=5 // pred_fallthru
        _
    $region6: #{tpu_custom_call.1} parent=1 // loop_footer
      %s25 = sadd.s32 1, %s21
    $region7: #{tpu_custom_call.1} parent=1 // loop_footer_branch
      %20 = sbr.rel target = $region3
    $region8: #{tpu_custom_call.1} parent=1 // loop_exit
      _
    %1038 = vsyncpa [#allocation3], 1
    %s1039 = scalar_lea.sflag [#allocation3], 1
    %1040 = vsyncpa %s1039, 1
    %1041 = vsyncpa [#allocation5], 1

</llo_original>
